<compile_context>
chip_gen: v7x
topology: tpu7x:2x2x1
jax: 0.10.0
libtpu: 0.0.40
codegen_flags: <defaults>
</compile_context>

<pallas_src>
import jax
import jax.numpy as jnp
from jax.experimental import pallas as pl
from jax.experimental.pallas import tpu as pltpu


def _mood_kernel(mood_ref, x_ref, o_ref):
    # SMEM scalar read once per block; broadcast-multiply on the VPU in the
    # output dtype (matches torch type promotion of x * mood_state).
    m = mood_ref[0].astype(o_ref.dtype)
    o_ref[...] = x_ref[...].astype(o_ref.dtype) * m


def _sublane_multiple(dtype) -> int:
    # Sublane packing quantum: 8 rows for f32, 16 for bf16, 32 for int8/fp8.
    return max(8, 32 // jnp.dtype(dtype).itemsize)


def _pick_tile_budget():
    """(block_bytes, vmem_limit_bytes) per TPU generation, with a safe fallback."""
    try:
        info = pltpu.get_tpu_info()
        if int(info.vmem_capacity_bytes) <= (64 << 20):
            # v7x: 64 MiB VMEM but ~3.2 TB/s HBM -> bigger tiles to amortize the
            # ~0.35 us per-grid-step overhead.  4 double-buffered 8 MiB tiles
            # = 32 MiB, so raise the scoped limit to 48 MiB for headroom.
            return (8 << 20), (48 << 20)
    except Exception:
        pass
    # v5e / v6e (128 MiB physical VMEM) or unknown: 4 MiB tiles, 16 MiB of
    # double buffers; 32 MiB scoped limit covers v5e's 16 MiB default.
    return (4 << 20), (32 << 20)


def mood_modulation(
    x: jax.Array,
    mood_state: jax.Array,
    *,
    block_bytes: int | None = None,
    min_steps: int = 4,
    force_pallas: bool = False,
    donate_x: bool = False,
) -> jax.Array:
    """Pallas TPU implementation of MoodModulationLayer.forward: x * mood_state.

    x: arbitrary-shaped array.  mood_state: (1,) parameter (nn.Parameter(torch.ones(1))).
    Output dtype = jnp.result_type(x.dtype, mood_state.dtype) (PyTorch promotion).
    """
    orig_shape = x.shape
    in_dtype = x.dtype
    out_dtype = jnp.result_type(in_dtype, mood_state.dtype)
    n = x.size
    if n == 0:
        return x.astype(out_dtype)

    # Tiny tensors: XLA's fused multiply beats pallas_call launch + per-step
    # overhead; only dispatch the kernel once the op is genuinely HBM-bound.
    if not force_pallas and n * jnp.dtype(in_dtype).itemsize < (1 << 20):
        return x.astype(out_dtype) * mood_state.astype(out_dtype)[0]

    # --- Layout: keep the original 128-multiple last dim as the lane axis. ---
    lane_ok = x.ndim >= 2 and (x.shape[-1] % 128 == 0)
    if lane_ok:
        D = x.shape[-1]
        x2 = x.reshape(-1, D)            # layout-preserving collapse of leading dims
        pad_tail = 0
    else:
        # Ragged / 1-D fallback: flatten to a 128-lane slab.
        # TODO(synk): this path pays one relayout copy; only used for odd last dims.
        D = 128
        flat = x.reshape(-1)
        pad_tail = (-n) % D
        if pad_tail:
            flat = jnp.pad(flat, (0, pad_tail))
        x2 = flat.reshape(-1, D)

    rows = x2.shape[0]
    sub = _sublane_multiple(in_dtype)

    if block_bytes is None:
        block_bytes, vmem_limit = _pick_tile_budget()
    else:
        _, vmem_limit = _pick_tile_budget()

    # Row-tile size: ~block_bytes per tile, but also split the rows into at
    # least `min_steps` blocks when possible so both v7x TensorCores get work
    # and DMA-in / compute / DMA-out overlap is preserved.
    if rows <= sub:
        tb = rows                         # full-extent row block (always legal)
    else:
        row_bytes = D * jnp.dtype(in_dtype).itemsize
        tb_budget = max(sub, (block_bytes // row_bytes) // sub * sub)
        tb_steps = max(sub, -(-(-(-rows // min_steps)) // sub) * sub)  # ceil/ceil to sub
        tb = min(tb_budget, tb_steps)
    num_blocks = pl.cdiv(rows, tb)        # partial last block is masked by Pallas

    # Advisory HBM roofline for XLA's scheduler (read x + write out).
    cost = pl.CostEstimate(
        flops=int(x2.size),
        transcendentals=0,
        bytes_accessed=int(
            x2.size * (jnp.dtype(in_dtype).itemsize + jnp.dtype(out_dtype).itemsize)
        ),
    )

    io_aliases = {}
    if donate_x and lane_ok and out_dtype == in_dtype:
        io_aliases = {1: 0}               # reuse x's HBM buffer for the output

    out2 = pl.pallas_call(
        _mood_kernel,
        out_shape=jax.ShapeDtypeStruct(x2.shape, out_dtype),
        grid_spec=pltpu.PrefetchScalarGridSpec(
            num_scalar_prefetch=0,
            grid=(num_blocks,),
            in_specs=[
                # Loop-invariant scalar, resident in SMEM for the whole call.
                pl.BlockSpec(memory_space=pltpu.MemorySpace.SMEM),
                # Lane-dense row tile of x; default 2-deep BlockSpec pipelining.
                pl.BlockSpec((tb, D), lambda i: (i, 0)),
            ],
            out_specs=pl.BlockSpec((tb, D), lambda i: (i, 0)),
        ),
        compiler_params=pltpu.CompilerParams(
            dimension_semantics=("parallel",),   # shard row blocks over v7x's 2 TCs
            vmem_limit_bytes=vmem_limit,
        ),
        cost_estimate=cost,
        input_output_aliases=io_aliases,
    )(mood_state, x2)

    if lane_ok:
        return out2.reshape(orig_shape)
    if pad_tail:
        return out2.reshape(-1)[:n].reshape(orig_shape)
    return out2.reshape(orig_shape)


if __name__ == "__main__":
    key = jax.random.PRNGKey(0)
    k1, k2, k3, k4 = jax.random.split(key, 4)

    mood_ones = jnp.ones((1,), dtype=jnp.float32)   # matches nn.Parameter(torch.ones(1))
    mood = jnp.full((1,), 0.75, dtype=jnp.float32)

    # 1) Small shape consistent with the module (input_dim=128); forced Pallas path,
    #    single full-extent row block.
    x_small = jax.random.normal(k1, (8, 128), dtype=jnp.float32)
    out_small = mood_modulation(x_small, mood_ones, force_pallas=True)
    jax.block_until_ready(out_small)
    assert out_small.shape == x_small.shape and out_small.dtype == x_small.dtype
    assert jnp.allclose(out_small, x_small * mood_ones[0])

    # 2) Multi-block path (grid >= 4): layout-preserving reshape, no padding,
    #    exercises tiling / pipelining / megacore sharding.
    x_big = jax.random.normal(k2, (2048, 256), dtype=jnp.float32)
    out_big = mood_modulation(x_big, mood)
    jax.block_until_ready(out_big)
    assert jnp.allclose(out_big, x_big * mood[0])

    # 3) Rows not divisible by the tile: masked partial last block via cdiv grid.
    x_odd = jax.random.normal(k3, (300, 128), dtype=jnp.float32)
    out_odd = mood_modulation(x_odd, mood, force_pallas=True)
    jax.block_until_ready(out_odd)
    assert jnp.allclose(out_odd, x_odd * mood[0])

    # 4) bf16 x with f32 mood_state: PyTorch-style promotion -> f32 output.
    x_bf = jax.random.normal(k4, (1024, 128), dtype=jnp.bfloat16)
    out_bf = mood_modulation(x_bf, mood, force_pallas=True)
    jax.block_until_ready(out_bf)
    assert out_bf.dtype == jnp.float32
    assert jnp.allclose(out_bf, x_bf.astype(jnp.float32) * mood[0])

    # 5) Tiny-tensor fallback (pure-JAX path, no kernel launch).
    x_tiny = jax.random.normal(key, (2, 32), dtype=jnp.float32)
    out_tiny = mood_modulation(x_tiny, mood_ones)
    jax.block_until_ready(out_tiny)
    assert jnp.allclose(out_tiny, x_tiny * mood_ones[0])

    print("KERNEL_OK")
</pallas_src>

<mosaic_0001>
module attributes {stable_mosaic.version = 11 : i64} {
  func.func @_mood_kernel(%arg0: i32, %arg1: memref<1xf32, #tpu.memory_space<smem>>, %arg2: memref<8x128xf32, #tpu.memory_space<vmem>>, %arg3: memref<8x128xf32, #tpu.memory_space<vmem>>) attributes {dimension_semantics = [#tpu.dimension_semantics<parallel>], iteration_bounds = array<i64: 1>, scalar_prefetch = 0 : i64, scratch_operands = 0 : i64, tpu.core_type = #tpu.core_type<tc>, window_params = [{transform_indices = @transform_0, window_bounds = array<i64: 1>}, {transform_indices = @transform_1, window_bounds = array<i64: 8, 128>}, {transform_indices = @transform_2, window_bounds = array<i64: 8, 128>}]} {
    %c0 = arith.constant 0 : index
    %0 = memref.load %arg1[%c0] : memref<1xf32, #tpu.memory_space<smem>>
    %c0_0 = arith.constant 0 : index
    %c0_1 = arith.constant 0 : index
    %1 = vector.load %arg2[%c0_0, %c0_1] : memref<8x128xf32, #tpu.memory_space<vmem>>, vector<8x128xf32>
    %2 = vector.broadcast %0 : f32 to vector<8x128xf32>
    %3 = arith.mulf %1, %2 : vector<8x128xf32>
    %c0_2 = arith.constant 0 : index
    %c0_3 = arith.constant 0 : index
    %4 = vector.load %arg3[%c0_2, %c0_3] : memref<8x128xf32, #tpu.memory_space<vmem>>, vector<8x128xf32>
    tpu.vector_store %arg3[%c0_2, %c0_3], %3 {strides = array<i32>} : memref<8x128xf32, #tpu.memory_space<vmem>>, vector<8x128xf32>,
    return
  }
  func.func @transform_0(%arg0: i32) -> i32 {
    %c0_i32 = arith.constant 0 : i32
    %c0_i32_0 = arith.constant 0 : i32
    return %c0_i32 : i32
  }
  func.func @transform_1(%arg0: i32) -> (i32, i32) {
    %c0_i32 = arith.constant 0 : i32
    %c0_i32_0 = arith.constant 0 : i32
    return %arg0, %c0_i32 : i32, i32
  }
  func.func @transform_2(%arg0: i32) -> (i32, i32) {
    %c0_i32 = arith.constant 0 : i32
    %c0_i32_0 = arith.constant 0 : i32
    return %arg0, %c0_i32 : i32, i32
  }
}

</mosaic_0001>

<llo_original>
// kernel: tpu_custom_call.1
$region0: #{tpu_custom_call.1}
  #allocation0 [shape = 'u32[]', space=smem, size = 0x4, offset = 0x4, fixed_abs, tag = 'smem constant byte address 0x4 - core index']
  #allocation1 [shape = 'u32[144,128]{1,0:T(1,128)}', space=vmem, size = 0x12000, scoped, tag = 'internal scratch']
  #allocation2 [shape = 'f32[1]{0:T(128)S(6)}', space=smem, size = 0x200, scoped, tag = 'scoped memory for tpu_custom_call.1']
  %s0 = inlined_call_operand.<no memory space> [shape: f32[1], index: 0, kind: input, shape index: {}]
  %s1 = inlined_call_operand.hbm [shape: f32[8,128], index: 1, kind: input, shape index: {}]
  %s2 = inlined_call_operand.hbm [shape: f32[8,128], index: 2, kind: output, shape index: {}]
  %s3 = sld [smem:[#allocation0]]
  $region22: #{tpu_custom_call.1} parent=0
    _
  %s5 = ssub.s32 1, %s3
  %s6 = scalar_select 0, %s5, %s3
  %7 = sst [smem:[#allocation2]] %s0
  $region1: #{tpu_custom_call.1} parent=0
    #allocation3 [shape = 'u8[4096]{0}', space=vmem, size = 0x1000, scoped, tag = 'input window, operand 1, single buffered']
    #allocation4 [shape = 's32[1]{0}', space=sflag, size = 0x4, scoped, tag = 'scoped memory for tpu_custom_call.1']
    #allocation5 [shape = 's32[1]{0}', space=sflag, size = 0x4, scoped, tag = 'scoped memory for tpu_custom_call.1']
    #allocation6 [shape = 'u8[4096]{0}', space=vmem, size = 0x1000, scoped, tag = 'output window, operand 0, single buffered']
    %8 = vsyncpa [#allocation4], 0
    %9 = vsyncpa [#allocation5], 0
    // Predicated region
    $region2: #{tpu_custom_call.1} parent=1 // pred_check
      _
    $region3: #{tpu_custom_call.1} parent=1 // pred_check_branch
      %11 = sbr.rel (0) target = $region5
    $region4: #{tpu_custom_call.1} parent=1 // pred_region
      _
    $region5: #{tpu_custom_call.1} parent=1 // pred_fallthru
      _
    // Predicated region
    $region6: #{tpu_custom_call.1} parent=1 // pred_check
      _
    $region7: #{tpu_custom_call.1} parent=1 // pred_check_branch
      %13 = sbr.rel (0) target = $region9
    $region8: #{tpu_custom_call.1} parent=1 // pred_region
      %s15 = ssub.s32 128, 128
      %16 = vsyncadd [#allocation4], %s15
      %s18 = sshll.u32 [#allocation3], 4
      %s19 = int_to_ptr.vmem [resolvable:$true] %s18
      %21 = dma.hbm_to_vmem [thread:$0]  %s1, 128, %s19, [#allocation4]
    $region9: #{tpu_custom_call.1} parent=1 // pred_fallthru
      _
    // Predicated region
    $region10: #{tpu_custom_call.1} parent=1 // pred_check
      _
    $region11: #{tpu_custom_call.1} parent=1 // pred_check_branch
      %23 = sbr.rel (0) target = $region13
    $region12: #{tpu_custom_call.1} parent=1 // pred_region
      %24 = dma.done [#allocation4], 128
    $region13: #{tpu_custom_call.1} parent=1 // pred_fallthru
      _
    %s25 = sld [smem:[#allocation2]]
    %v26 = vld [vmem:[#allocation3] sm:$0xff]
    %v27 = vstv %s25
    %v28 = vmul.f32 %v26, %v27
    %29 = vst [vmem:[#allocation6] sm:$0xff] %v28
    // Predicated region
    $region14: #{tpu_custom_call.1} parent=1 // pred_check
      _
    $region15: #{tpu_custom_call.1} parent=1 // pred_check_branch
      %31 = sbr.rel (0) target = $region17
    $region16: #{tpu_custom_call.1} parent=1 // pred_region
      %s33 = ssub.s32 128, 128
      %34 = vsyncadd [#allocation5], %s33
      %s36 = sshll.u32 [#allocation6], 4
      %s37 = int_to_ptr.vmem [resolvable:$true] %s36
      %39 = dma.vmem_to_hbm [thread:$0]  %s37, 128, %s2, [#allocation5]
    $region17: #{tpu_custom_call.1} parent=1 // pred_fallthru
      _
    // Predicated region
    $region18: #{tpu_custom_call.1} parent=1 // pred_check
      _
    $region19: #{tpu_custom_call.1} parent=1 // pred_check_branch
      %41 = sbr.rel (0) target = $region21
    $region20: #{tpu_custom_call.1} parent=1 // pred_region
      %42 = dma.done [#allocation5], 128
    $region21: #{tpu_custom_call.1} parent=1 // pred_fallthru
      _
    %43 = vsyncpa [#allocation4], 1
    %44 = vsyncpa [#allocation5], 1

</llo_original>
